<compile_context>
chip_gen: v5e
topology: v5e:2x2
jax: 0.10.0
libtpu: 0.0.40
codegen_flags: <defaults>
</compile_context>

<pallas_src>
import jax
import jax.numpy as jnp
from jax import lax
from jax.experimental import pallas as pl
from jax.experimental.pallas import tpu as pltpu


def m_net_kernel(m1_ref, o_ref):
    # m1_ref: SMEM (1,) float32 scalar parameter
    # o_ref:  VMEM (bs, 4) output tile; lane k holds flat-2x2 element k
    bs, lanes = o_ref.shape
    m1 = m1_ref[0].astype(o_ref.dtype)
    # Diagonal of a row-major flattened 2x2 = lanes 0 and 3.  Built with iota
    # so the kernel captures no array constants.
    lane = lax.broadcasted_iota(jnp.int32, (bs, lanes), dimension=1)
    diag = jnp.logical_or(lane == 0, lane == 3)
    o_ref[...] = jnp.where(diag, m1, 0.0).astype(o_ref.dtype)


def m_net_forward(t, coords, mass1, dtype=jnp.float32):
    """Pallas implementation of M_Net.forward.

    t:      unused (kept to mirror the PyTorch signature)
    coords: (bs, num_states) -- only bs is used
    mass1:  (1,) parameter
    returns M of shape (bs, 2, 2) with M[:,0,0] = M[:,1,1] = mass1, off-diag 0
    """
    del t  # unused, as in the reference module
    bs = coords.shape[0]

    # Single grid-less call: output is one tiny full-array block (exempt from
    # the (8,128) divisibility rule), so no padding / no grid steps needed.
    slab = pl.pallas_call(
        m_net_kernel,
        out_shape=jax.ShapeDtypeStruct((bs, 4), dtype),
        in_specs=[pl.BlockSpec(memory_space=pltpu.SMEM)],
        out_specs=pl.BlockSpec(memory_space=pltpu.VMEM),
        cost_estimate=pl.CostEstimate(
            flops=0, transcendentals=0, bytes_accessed=16 * bs),
    )(mass1.astype(jnp.float32))

    # (bs, 4) -> (bs, 2, 2): free row-major reshape, no transpose/copy.
    return slab.reshape(bs, 2, 2)


if __name__ == "__main__":
    key = jax.random.PRNGKey(0)
    k_m, k_c = jax.random.split(key)

    # deterministic parameter init: mass1 = 0.1 * randn(1)
    mass1 = 0.1 * jax.random.normal(k_m, (1,), dtype=jnp.float32)

    # small inputs: single pendulum -> num_states = 2, batch = 8
    bs, num_states = 8, 2
    coords = jax.random.normal(k_c, (bs, num_states), dtype=jnp.float32)
    t = jnp.zeros((), dtype=jnp.float32)

    M = m_net_forward(t, coords, mass1)
    M = jax.block_until_ready(M)

    # sanity check against the reference semantics
    ref = jnp.zeros((bs, 2, 2), dtype=jnp.float32)
    ref = ref.at[:, 0, 0].add(mass1[0]).at[:, 1, 1].add(mass1[0])
    assert M.shape == (bs, 2, 2)
    assert jnp.allclose(M, ref), "mismatch vs reference"

    print("KERNEL_OK")
</pallas_src>

<mosaic_0001>
module attributes {stable_mosaic.version = 11 : i64} {
  func.func @m_net_kernel(%arg0: memref<1xf32, #tpu.memory_space<smem>>, %arg1: memref<8x4xf32, #tpu.memory_space<vmem>>) attributes {dimension_semantics = [], scalar_prefetch = 0 : i64, scratch_operands = 0 : i64, tpu.core_type = #tpu.core_type<tc>} {
    %c0 = arith.constant 0 : index
    %0 = memref.load %arg0[%c0] : memref<1xf32, #tpu.memory_space<smem>>
    %1 = tpu.iota {dimensions = array<i32: 1>} : vector<8x4xi32>
    %c0_i32 = arith.constant 0 : i32
    %2 = vector.broadcast %c0_i32 : i32 to vector<8x4xi32>
    %3 = arith.cmpi eq, %1, %2 : vector<8x4xi32>
    %c3_i32 = arith.constant 3 : i32
    %4 = vector.broadcast %c3_i32 : i32 to vector<8x4xi32>
    %5 = arith.cmpi eq, %1, %4 : vector<8x4xi32>
    %6 = arith.ori %3, %5 : vector<8x4xi1>
    %cst = arith.constant 0.000000e+00 : f32
    %7 = vector.broadcast %0 : f32 to vector<8x4xf32>
    %8 = vector.broadcast %cst : f32 to vector<8x4xf32>
    %9 = arith.select %6, %7, %8 : vector<8x4xi1>, vector<8x4xf32>
    %c0_0 = arith.constant 0 : index
    %c0_1 = arith.constant 0 : index
    %10 = vector.load %arg1[%c0_0, %c0_1] : memref<8x4xf32, #tpu.memory_space<vmem>>, vector<8x4xf32>
    tpu.vector_store %arg1[%c0_0, %c0_1], %9 {strides = array<i32>} : memref<8x4xf32, #tpu.memory_space<vmem>>, vector<8x4xf32>,
    return
  }
}

</mosaic_0001>

<llo_original>
// kernel: tpu_custom_call.1
$region0: #{tpu_custom_call.1}
  #allocation0 [shape = 'u32[]', space=smem, size = 0x4, offset = 0x4, fixed_abs, tag = 'smem constant byte address 0x4 - core index']
  #allocation1 [shape = 'u32[72,128]{1,0:T(1,128)}', space=vmem, size = 0x9000, scoped, tag = 'internal scratch']
  #allocation2 [shape = 'f32[1]{0:T(128)S(6)}', space=smem, size = 0x200, scoped, tag = 'scoped memory for tpu_custom_call.1']
  %s0 = inlined_call_operand.<no memory space> [shape: f32[1], index: 0, kind: input, shape index: {}]
  %s1 = inlined_call_operand.vmem [shape: f32[8,4], index: 1, kind: output, shape index: {}]
  %s2 = sld [smem:[#allocation0]]
  $region14: #{tpu_custom_call.1} parent=0
    _
  %s4 = ssub.s32 1, %s2
  %s5 = scalar_select 0, %s4, %s2
  %6 = sst [smem:[#allocation2]] %s0
  // Predicated region
  $region2: #{tpu_custom_call.1} parent=0 // pred_check
    _
  $region3: #{tpu_custom_call.1} parent=0 // pred_check_branch
    %8 = sbr.rel (0) target = $region5
  $region4: #{tpu_custom_call.1} parent=0 // pred_region
    _
  $region5: #{tpu_custom_call.1} parent=0 // pred_fallthru
    _
  %s9 = sld [smem:[#allocation2]]
  %v10 = vlaneseq
  %v11 = vand.u32 %v10, 127
  %vm12 = vcmp.eq.s32.totalorder %v11, 0
  %vm13 = vcmp.eq.s32.totalorder %v11, 3
  %vm14 = vmor %vm12, %vm13
  %v15 = vstv %s9
  %v16 = vsel %vm14, %v15, 0.0
  %vm17 = vcmask 31744
  %18 = vst.msk [vmem:[%s1] sm:$0xff] %vm17, %v16
  // Predicated region
  $region6: #{tpu_custom_call.1} parent=0 // pred_check
    _
  $region7: #{tpu_custom_call.1} parent=0 // pred_check_branch
    %20 = sbr.rel (0) target = $region9
  $region8: #{tpu_custom_call.1} parent=0 // pred_region
    _
  $region9: #{tpu_custom_call.1} parent=0 // pred_fallthru
    _
  // Predicated region
  $region10: #{tpu_custom_call.1} parent=0 // pred_check
    _
  $region11: #{tpu_custom_call.1} parent=0 // pred_check_branch
    %22 = sbr.rel (0) target = $region13
  $region12: #{tpu_custom_call.1} parent=0 // pred_region
    _
  $region13: #{tpu_custom_call.1} parent=0 // pred_fallthru
    _

</llo_original>
